<compile_context>
chip_gen: v7x
topology: tpu7x:2x2x1
jax: 0.10.0
libtpu: 0.0.40
codegen_flags: <defaults>
</compile_context>

<pallas_src>
import jax
import jax.numpy as jnp
from jax.experimental import pallas as pl
from jax.experimental.pallas import tpu as pltpu


def _wx_kernel(w_ref, x_ref, o_ref):
    # w_ref: (C_out, C_in)   -- torch Linear weight used as-is (no transpose)
    # x_ref: (C_in, tile_s)  -- native-layout slice of x (no permute in HBM)
    # o_ref: (C_out, tile_s) -- lane axis = tile_s (multiple of 128) => dense vst
    o_ref[...] = jnp.dot(
        w_ref[...], x_ref[...], preferred_element_type=jnp.float32
    ).astype(o_ref.dtype)


def _pick_tile_s(S, B, C_in, C_out, dtype_bytes, vmem_budget_bytes):
    """Largest S tile (multiple of 128) whose double-buffered x/out tiles fit."""
    per_s = 2 * (C_in + C_out) * dtype_bytes          # x + out double buffers
    w_bytes = 2 * C_in * C_out * dtype_bytes          # resident weight buffers
    avail = max(vmem_budget_bytes - w_bytes, 128 * per_s)
    tile_s = min(avail // per_s, 8192)
    if B == 1:
        # Keep >= 2 grid steps along the parallel S axis so both v7x
        # TensorCores get work even for a single batch.
        tile_s = min(tile_s, max(128, pl.cdiv(S, 2)))
    tile_s = max(128, (int(tile_s) // 128) * 128)
    return S if tile_s >= S else tile_s


def permute_linear(x1, weight, *, vmem_budget_bytes=16 * 1024 * 1024,
                   min_pallas_flops=1 << 18):
    """x1: (B, C_in, S), weight: (C_out, C_in) as in torch.nn.Linear(bias=False).

    Returns (B, S, C_out) == x1.permute(0, 2, 1) @ weight.T
    """
    B, C_in, S = x1.shape
    C_out, c_in_w = weight.shape
    assert c_in_w == C_in

    # Tiny (sub-vreg) problems: pallas_call fixed overhead dominates -> plain XLA.
    if 2 * B * S * C_in * C_out < min_pallas_flops or S < 128:
        return jnp.einsum("bcs,oc->bso", x1, weight)

    dtype_bytes = jnp.dtype(x1.dtype).itemsize
    tile_s = _pick_tile_s(S, B, C_in, C_out, dtype_bytes, vmem_budget_bytes)
    num_s = pl.cdiv(S, tile_s)

    cost = pl.CostEstimate(
        flops=2 * B * S * C_in * C_out,
        bytes_accessed=(B * C_in * S + C_in * C_out + B * C_out * S) * dtype_bytes,
        transcendentals=0,
    )

    # Kernel output is (B, C_out, S): lane-dense along S.  The output-side
    # permute back to (B, S, C_out) is a cheap XLA layout change on the
    # (smaller) output tensor and can fuse into the consumer.
    out_bcs = pl.pallas_call(
        _wx_kernel,
        out_shape=jax.ShapeDtypeStruct((B, C_out, S), x1.dtype),
        grid_spec=pltpu.PrefetchScalarGridSpec(
            num_scalar_prefetch=0,
            grid=(B, num_s),
            in_specs=[
                # Weight is resident in VMEM (constant index map).
                # TODO(synk): for very large C_in*C_out on v7x (64 MiB VMEM),
                # add pipeline_mode=pl.Buffered(1) and/or tile C_out / C_in
                # with an f32 accumulator.
                pl.BlockSpec((C_out, C_in), lambda b, s: (0, 0)),
                # Native (B, C_in, S) layout; batch dim squeezed out.
                pl.BlockSpec((None, C_in, tile_s), lambda b, s: (b, 0, s)),
            ],
            out_specs=pl.BlockSpec((None, C_out, tile_s), lambda b, s: (b, 0, s)),
        ),
        compiler_params=pltpu.CompilerParams(
            dimension_semantics=("parallel", "parallel"),
            vmem_limit_bytes=32 * 1024 * 1024,
        ),
        cost_estimate=cost,
    )(weight, x1)

    return jnp.transpose(out_bcs, (0, 2, 1))


if __name__ == "__main__":
    key = jax.random.PRNGKey(0)
    kx, kw = jax.random.split(key)

    # Small shapes consistent with the module: x1 is (B, C_in, S); the Linear
    # maps C_in -> C_out over the permuted last axis.  S = 256 so the Pallas
    # path (not the tiny-problem einsum fallback) is exercised.
    B, C_in, S, C_out = 2, 32, 256, 16
    x1 = jax.random.normal(kx, (B, C_in, S), dtype=jnp.float32)
    # torch.nn.Linear weight shape: (out_features, in_features).
    weight = jax.random.normal(kw, (C_out, C_in), dtype=jnp.float32) * 0.1

    out = permute_linear(x1, weight)
    jax.block_until_ready(out)

    # Reference (plain JAX): permute then linear (no bias).
    ref = jnp.einsum("bcs,oc->bso", x1, weight)
    assert out.shape == (B, S, C_out)
    assert jnp.allclose(out, ref, atol=1e-5, rtol=1e-5)

    # Also sanity-check the tiny-problem fallback at module-like toy shapes.
    x_tiny = jax.random.normal(key, (1, 2, 2), dtype=jnp.float32)
    w_tiny = jax.random.normal(kw, (1, 2), dtype=jnp.float32)
    out_tiny = permute_linear(x_tiny, w_tiny)
    ref_tiny = jnp.einsum("bcs,oc->bso", x_tiny, w_tiny)
    assert jnp.allclose(out_tiny, ref_tiny, atol=1e-5, rtol=1e-5)

    print("KERNEL_OK")
</pallas_src>

<mosaic_0001>
module attributes {stable_mosaic.version = 11 : i64} {
  func.func @_wx_kernel(%arg0: i32, %arg1: i32, %arg2: memref<16x32xf32, #tpu.memory_space<vmem>>, %arg3: memref<1x32x256xf32, #tpu.memory_space<vmem>>, %arg4: memref<1x16x256xf32, #tpu.memory_space<vmem>>) attributes {dimension_semantics = [#tpu.dimension_semantics<parallel>, #tpu.dimension_semantics<parallel>], iteration_bounds = array<i64: 2, 1>, scalar_prefetch = 0 : i64, scratch_operands = 0 : i64, tpu.core_type = #tpu.core_type<tc>, window_params = [{pipeline_mode = #tpu.pipeline_mode<synchronous>, transform_indices = @transform_0, window_bounds = array<i64: 16, 32>}, {transform_indices = @transform_1, window_bounds = array<i64: 1, 32, 256>}, {transform_indices = @transform_2, window_bounds = array<i64: 1, 16, 256>}]} {
    %c0 = arith.constant 0 : index
    %c0_0 = arith.constant 0 : index
    %0 = vector.load %arg2[%c0, %c0_0] : memref<16x32xf32, #tpu.memory_space<vmem>>, vector<16x32xf32>
    %c0_1 = arith.constant 0 : index
    %c0_2 = arith.constant 0 : index
    %c0_3 = arith.constant 0 : index
    %1 = vector.load %arg3[%c0_1, %c0_2, %c0_3] : memref<1x32x256xf32, #tpu.memory_space<vmem>>, vector<1x32x256xf32>
    %2 = vector.shape_cast %1 : vector<1x32x256xf32> to vector<32x256xf32>
    %cst = arith.constant dense<0.000000e+00> : vector<16x256xf32>
    %3 = tpu.matmul %0, %2, %cst {dimension_numbers = #tpu.dot_dimension_numbers<[1], [0], [0], [1], [0, 0, 1, 1], [], []>} : vector<16x32xf32>, vector<32x256xf32>, vector<16x256xf32> -> vector<16x256xf32>
    %c0_4 = arith.constant 0 : index
    %c0_5 = arith.constant 0 : index
    %c0_6 = arith.constant 0 : index
    %4 = vector.load %arg4[%c0_4, %c0_5, %c0_6] : memref<1x16x256xf32, #tpu.memory_space<vmem>>, vector<1x16x256xf32>
    %5 = vector.shape_cast %4 : vector<1x16x256xf32> to vector<16x256xf32>
    %6 = vector.shape_cast %3 : vector<16x256xf32> to vector<1x16x256xf32>
    tpu.vector_store %arg4[%c0_4, %c0_5, %c0_6], %6 {strides = array<i32>} : memref<1x16x256xf32, #tpu.memory_space<vmem>>, vector<1x16x256xf32>,
    return
  }
  func.func @transform_0(%arg0: i32, %arg1: i32) -> (i32, i32) {
    %c0_i32 = arith.constant 0 : i32
    %c0_i32_0 = arith.constant 0 : i32
    %c0_i32_1 = arith.constant 0 : i32
    return %c0_i32, %c0_i32_0 : i32, i32
  }
  func.func @transform_1(%arg0: i32, %arg1: i32) -> (i32, i32, i32) {
    %c0_i32 = arith.constant 0 : i32
    %c0_i32_0 = arith.constant 0 : i32
    return %arg0, %c0_i32, %arg1 : i32, i32, i32
  }
  func.func @transform_2(%arg0: i32, %arg1: i32) -> (i32, i32, i32) {
    %c0_i32 = arith.constant 0 : i32
    %c0_i32_0 = arith.constant 0 : i32
    return %arg0, %c0_i32, %arg1 : i32, i32, i32
  }
}

</mosaic_0001>

<llo_original>
// kernel: tpu_custom_call.1
$region0: #{tpu_custom_call.1}
  #allocation0 [shape = 'u32[]', space=smem, size = 0x4, offset = 0x4, fixed_abs, tag = 'smem constant byte address 0x4 - core index']
  #allocation1 [shape = 'u32[144,128]{1,0:T(1,128)}', space=vmem, size = 0x12000, scoped, tag = 'internal scratch']
  %s0 = inlined_call_operand.hbm [shape: f32[16,32], index: 0, kind: input, shape index: {}]
  %s1 = inlined_call_operand.hbm [shape: f32[2,32,256], index: 1, kind: input, shape index: {}]
  %s2 = inlined_call_operand.hbm [shape: f32[2,16,256], index: 2, kind: output, shape index: {}]
  %s3 = sld [smem:[#allocation0]]
  $region49: #{tpu_custom_call.1} parent=0
    _
  %s5 = ssub.s32 1, %s3
  %s6 = scalar_select 0, %s5, %s3
  $region1: #{tpu_custom_call.1} parent=0
    #allocation2 [shape = 'u8[8192]{0}', space=vmem, size = 0x2000, scoped, tag = 'input window, operand 0, single buffered']
    #allocation3 [shape = 's32[2]{0}', space=sflag, size = 0x8, scoped, tag = 'scoped memory for tpu_custom_call.1']
    #allocation4 [shape = 's32[2]{0}', space=sflag, size = 0x8, scoped, tag = 'scoped memory for tpu_custom_call.1']
    #allocation5 [shape = 'u8[65536]{0}', space=vmem, size = 0x10000, scoped, tag = 'input window, operand 1']
    #allocation6 [shape = 's32[2]{0}', space=sflag, size = 0x8, scoped, tag = 'scoped memory for tpu_custom_call.1']
    #allocation7 [shape = 'u8[32768]{0}', space=vmem, size = 0x8000, scoped, tag = 'output window, operand 0']
    %7 = vsyncpa [#allocation3], 0
    %8 = vsyncpa [#allocation6], 0
    %s9 = scalar_lea.sflag [#allocation6], 1
    %10 = vsyncpa %s9, 0
    %11 = vsyncpa [#allocation4], 0
    %s12 = scalar_lea.sflag [#allocation4], 1
    %13 = vsyncpa %s12, 0
    loop: start=0, step=1, limit=4
    $region2: #{tpu_custom_call.1} parent=1 // loop_pre_header
      _
    $region3: #{tpu_custom_call.1} parent=1 // loop_header
      %s15 = sphi 0, %s19
      %p16 = scmp.ge.s32.totalorder %s15, 4
      %s22 = sphi 0, %s34
      %s23 = sphi 0, %s30
      %s24 = sphi 0, %s22
      %s25 = sphi 0, %s23
      %s26 = sphi 0, %s24
      %s27 = sphi 0, %s25
      %s35 = sphi 0, %s35
      %s37 = sphi 0, %s35
      %s38 = sphi 0, %s37
      %s52 = sphi 0, %s38
      %s60 = sphi 0, %s62
      %s63 = sphi 0, %s60
      %s64 = sphi 0, %s63
      %s80 = sphi 0, %s64
      %s88 = sphi 0, %s90
      %s91 = sphi 0, %s88
      %s92 = sphi 0, %s91
      %s108 = sphi 0, %s92
    $region4: #{tpu_custom_call.1} parent=1 // loop_header_branch
      %18 = sbr.rel (%p16) target = $region8
    $region5: #{tpu_custom_call.1} parent=1 // loop_body
      %s20 = ssub.s32 %s15, 1
      %s21 = ssub.s32 %s15, 2
      %s28 = sadd.s32 1, %s23
      %p29 = scmp.ge.s32.totalorder %s28, 1
      %s30 = scalar_select %p29, 0, %s28
      %s31 = sadd.s32 1, %s22
      %s32 = scalar_select %p29, %s31, %s22
      %p33 = scmp.ge.s32.totalorder %s32, 2
      %s34 = scalar_select %p33, 0, %s32
      %s36 = sadd.s32 %s35, 1
      %p39 = scmp.eq.s32.totalorder %s15, 1
      %p40 = scmp.ne.s32.totalorder %s35, %s37
      %p41 = scmp.eq.s32.totalorder %s15, 0
      %p42 = por %p40, %p41
      %p43 = scmp.ne.s32.totalorder %s35, %s37
      %p44 = scmp.eq.s32.totalorder %s20, 1
      %p45 = por %p43, %p44
      %p46 = scmp.ne.s32.totalorder %s37, %s38
      %p47 = scmp.eq.s32.totalorder %s20, 0
      %p48 = por %p46, %p47
      %p49 = scmp.ne.s32.totalorder %s37, %s38
      %p50 = scmp.eq.s32.totalorder %s21, 1
      %p51 = por %p49, %p50
      %p53 = scmp.ne.s32.totalorder %s38, %s52
      %p54 = scmp.eq.s32.totalorder %s21, 0
      %p55 = por %p53, %p54
      %s56 = ssub.s32 %s22, %s34
      %s57 = ssub.s32 %s23, %s30
      %s58 = sor.u32 %s56, %s57
      %p59 = scmp.eq.s32.totalorder %s58, 0
      %s61 = sadd.s32 %s60, 1
      %s62 = scalar_select %p59, %s60, %s61
      %p65 = pneg %p59
      %p66 = scmp.eq.s32.totalorder %s15, 1
      %p67 = por %p65, %p66
      %p68 = scmp.ne.s32.totalorder %s60, %s63
      %p69 = scmp.eq.s32.totalorder %s15, 0
      %p70 = por %p68, %p69
      %p71 = scmp.ne.s32.totalorder %s60, %s63
      %p72 = scmp.eq.s32.totalorder %s20, 1
      %p73 = por %p71, %p72
      %p74 = scmp.ne.s32.totalorder %s63, %s64
      %p75 = scmp.eq.s32.totalorder %s20, 0
      %p76 = por %p74, %p75
      %p77 = scmp.ne.s32.totalorder %s63, %s64
      %p78 = scmp.eq.s32.totalorder %s21, 1
      %p79 = por %p77, %p78
      %p81 = scmp.ne.s32.totalorder %s64, %s80
      %p82 = scmp.eq.s32.totalorder %s21, 0
      %p83 = por %p81, %p82
      %s84 = ssub.s32 %s22, %s34
      %s85 = ssub.s32 %s23, %s30
      %s86 = sor.u32 %s84, %s85
      %p87 = scmp.eq.s32.totalorder %s86, 0
      %s89 = sadd.s32 %s88, 1
      %s90 = scalar_select %p87, %s88, %s89
      %p93 = pneg %p87
      %p94 = scmp.eq.s32.totalorder %s15, 1
      %p95 = por %p93, %p94
      %p96 = scmp.ne.s32.totalorder %s88, %s91
      %p97 = scmp.eq.s32.totalorder %s15, 0
      %p98 = por %p96, %p97
      %p99 = scmp.ne.s32.totalorder %s88, %s91
      %p100 = scmp.eq.s32.totalorder %s20, 1
      %p101 = por %p99, %p100
      %p102 = scmp.ne.s32.totalorder %s91, %s92
      %p103 = scmp.eq.s32.totalorder %s20, 0
      %p104 = por %p102, %p103
      %p105 = scmp.ne.s32.totalorder %s91, %s92
      %p106 = scmp.eq.s32.totalorder %s21, 1
      %p107 = por %p105, %p106
      %p109 = scmp.ne.s32.totalorder %s92, %s108
      %p110 = scmp.eq.s32.totalorder %s21, 0
      %p111 = por %p109, %p110
      %p112 = scmp.le.s32.totalorder 1, %s15
      %p113 = scmp.lt.s32.totalorder %s15, 3
      %p114 = pnand %p112, %p113
      %p115 = pneg %p114
      // Predicated region
      $region9: #{tpu_custom_call.1} parent=5 // pred_check
        _
      $region10: #{tpu_custom_call.1} parent=5 // pred_check_branch
        %117 = sbr.rel (%p114) target = $region12
      $region11: #{tpu_custom_call.1} parent=5 // pred_region
        %s118 = ssub.s32 %s15, 1
        // Predicated region
        $region13: #{tpu_custom_call.1} parent=11 // pred_check
          %p119 = pneg %p48
        $region14: #{tpu_custom_call.1} parent=11 // pred_check_branch
          %121 = sbr.rel (%p119) target = $region16
        $region15: #{tpu_custom_call.1} parent=11 // pred_region
          %s123 = ssub.s32 256, 256
          %124 = vsyncadd [#allocation3], %s123
          %s125 = sshll.u32 [#allocation2], 4
          %s126 = int_to_ptr.vmem [resolvable:$true] %s125
          %131 = dma.hbm_to_vmem [thread:$0]  %s0, 256, %s126, [#allocation3], 128, 128, 8
        $region16: #{tpu_custom_call.1} parent=11 // pred_fallthru
          _
      $region12: #{tpu_custom_call.1} parent=5 // pred_fallthru
        _
      %p132 = scmp.lt.s32.totalorder %s15, 2
      // Predicated region
      $region17: #{tpu_custom_call.1} parent=5 // pred_check
        %p133 = pneg %p132
      $region18: #{tpu_custom_call.1} parent=5 // pred_check_branch
        %135 = sbr.rel (%p133) target = $region20
      $region19: #{tpu_custom_call.1} parent=5 // pred_region
        // Predicated region
        $region21: #{tpu_custom_call.1} parent=19 // pred_check
          %p136 = pneg %p70
        $region22: #{tpu_custom_call.1} parent=19 // pred_check_branch
          %138 = sbr.rel (%p136) target = $region24
        $region23: #{tpu_custom_call.1} parent=19 // pred_region
          %s139 = sand.u32 %s60, 1
          %s140 = scalar_lea.sflag [#allocation6], %s139
          %s141 = sand.u32 %s60, 1
          %s142 = smul.addr %s141, 64
          %s143 = scalar_lea.vmem [#allocation5], %s142
          %s144 = smul.u32 2, %s23
          %s146 = ssub.s32 1024, 1024
          %147 = vsyncadd %s140, %s146
          %s148 = smul.addr %s22, 8
          %s149 = sadd.s32 %s144, %s148
          %s150 = smul.addr %s149, 128
          %s151 = scalar_lea.hbm %s1, %s150
          %s152 = sshll.u32 %s143, 4
          %s153 = int_to_ptr.vmem [resolvable:$true] %s152
          %158 = dma.hbm_to_vmem [thread:$0]  %s151, 1024, %s153, %s140, 256, 256, 16
        $region24: #{tpu_custom_call.1} parent=19 // pred_fallthru
          _
      $region20: #{tpu_custom_call.1} parent=5 // pred_fallthru
        _
      %p159 = scmp.le.s32.totalorder 1, %s15
      %p160 = scmp.lt.s32.totalorder %s15, 3
      %p161 = pnand %p159, %p160
      %p162 = pneg %p161
      // Predicated region
      $region25: #{tpu_custom_call.1} parent=5 // pred_check
        _
      $region26: #{tpu_custom_call.1} parent=5 // pred_check_branch
        %164 = sbr.rel (%p161) target = $region28
      $region27: #{tpu_custom_call.1} parent=5 // pred_region
        %s165 = ssub.s32 %s15, 1
        // Predicated region
        $region29: #{tpu_custom_call.1} parent=27 // pred_check
          %p166 = pneg %p48
        $region30: #{tpu_custom_call.1} parent=27 // pred_check_branch
          %168 = sbr.rel (%p166) target = $region32
        $region31: #{tpu_custom_call.1} parent=27 // pred_region
          %169 = dma.done [#allocation3], 256
        $region32: #{tpu_custom_call.1} parent=27 // pred_fallthru
          _
        %s170 = sand.u32 %s63, 1
        %s171 = scalar_lea.sflag [#allocation6], %s170
        %s172 = sand.u32 %s63, 1
        %s173 = smul.addr %s172, 64
        %s174 = scalar_lea.vmem [#allocation5], %s173
        // Predicated region
        $region33: #{tpu_custom_call.1} parent=27 // pred_check
          %p175 = pneg %p76
        $region34: #{tpu_custom_call.1} parent=27 // pred_check_branch
          %177 = sbr.rel (%p175) target = $region36
        $region35: #{tpu_custom_call.1} parent=27 // pred_region
          %178 = dma.done %s171, 1024
        $region36: #{tpu_custom_call.1} parent=27 // pred_fallthru
          _
        %p179 = pneg %p48
        %p180 = pneg %p45
        %s181 = sand.u32 %s63, 1
        %s182 = scalar_lea.sflag [#allocation6], %s181
        %s183 = sand.u32 %s63, 1
        %s184 = smul.addr %s183, 64
        %s185 = scalar_lea.vmem [#allocation5], %s184
        %p186 = pneg %p76
        %p187 = pneg %p73
        %p188 = pneg %p104
        %p189 = pneg %p101
        %s190 = sand.u32 %s91, 1
        %s191 = scalar_lea.sflag [#allocation4], %s190
        %s192 = sand.u32 %s91, 1
        %s193 = smul.addr %s192, 32
        %s194 = scalar_lea.vmem [#allocation7], %s193
        %s195 = smul.u32 2, %s25
        %s196 = smul.u32 2, %s25
        %v197 = vld [vmem:[#allocation2] sm:$0xff]
        %v198 = vld [vmem:[#allocation2 + $0x8] sm:$0xff]
        %v199 = vld [vmem:[%s174] sm:$0xff]
        %v200 = vld [vmem:[%s174 + $0x8] sm:$0xff]
        %v201 = vld [vmem:[%s174 + $0x10] sm:$0xff]
        %v202 = vld [vmem:[%s174 + $0x18] sm:$0xff]
        %v203 = vld [vmem:[%s174 + $0x20] sm:$0xff]
        %v204 = vld [vmem:[%s174 + $0x28] sm:$0xff]
        %v205 = vld [vmem:[%s174 + $0x30] sm:$0xff]
        %v206 = vld [vmem:[%s174 + $0x38] sm:$0xff]
        %vm207 = vcmask 261120
        %v209 = vsel %vm207, %v197, 0
        %v212 = vsel %vm207, %v198, 0
        %214 = vmatprep.subr.mxu0 %v200
        %215 = vmatpush1.msra.mxu0 %v199
        %216 = vmatprep.subr.mxu0 %v202
        %217 = vmatpush1.msra.mxu0 %v201
        %218 = vmatprep.subr.mxu0 %v204
        %219 = vmatpush1.msra.mxu0 %v203
        %220 = vmatprep.subr.mxu0 %v206
        %221 = vmatpush1.msra.mxu0 %v205
        %222 = vmatprep.subr.mxu0 0.0
        %223 = vmatpush1.msra.mxu0 0.0
        %224 = vmatprep.subr.mxu0 0.0
        %225 = vmatpush1.msra.mxu0 0.0
        %226 = vmatprep.subr.mxu0 0.0
        %227 = vmatpush1.msra.mxu0 0.0
        %228 = vmatprep.subr.mxu0 0.0
        %229 = vmatpush1.msra.mxu0 0.0
        %230 = vmatprep.subr.mxu0 0.0
        %231 = vmatpush1.msra.mxu0 0.0
        %232 = vmatprep.subr.mxu0 0.0
        %233 = vmatpush1.msra.mxu0 0.0
        %234 = vmatprep.subr.mxu0 0.0
        %235 = vmatpush1.msra.mxu0 0.0
        %236 = vmatprep.subr.mxu0 0.0
        %237 = vmatpush1.msra.mxu0 0.0
        %238 = vmatprep.subr.mxu0 0.0
        %239 = vmatpush1.msra.mxu0 0.0
        %240 = vmatprep.subr.mxu0 0.0
        %241 = vmatpush1.msra.mxu0 0.0
        %242 = vmatprep.subr.mxu0 0.0
        %243 = vmatpush1.msra.mxu0 0.0
        %244 = vmatprep.subr.mxu0 0.0
        %245 = vmatpush1.msra.mxu0 0.0
        %246 = vmatprep.subr.mxu0 0.0
        %247 = vmatpush1.msra.mxu0 0.0
        %248 = vmatprep.subr.mxu0 0.0
        %249 = vmatpush1.msra.mxu0 0.0
        %250 = vmatprep.subr.mxu0 0.0
        %251 = vmatpush1.msra.mxu0 0.0
        %252 = vmatprep.subr.mxu0 0.0
        %253 = vmatpush1.msra.mxu0 0.0
        %254 = vmatprep.subr.mxu0 0.0
        %255 = vmatpush1.msra.mxu0 0.0
        %256 = vmatprep.subr.mxu0 0.0
        %257 = vmatpush1.msra.mxu0 0.0
        %258 = vmatprep.subr.mxu0 0.0
        %259 = vmatpush1.msra.mxu0 0.0
        %260 = vmatprep.subr.mxu0 0.0
        %261 = vmatpush1.msra.mxu0 0.0
        %262 = vmatprep.subr.mxu0 0.0
        %263 = vmatpush1.msra.mxu0 0.0
        %264 = vmatprep.subr.mxu0 0.0
        %265 = vmatpush1.msra.mxu0 0.0
        %266 = vmatprep.subr.mxu0 0.0
        %267 = vmatpush1.msra.mxu0 0.0
        %268 = vmatprep.subr.mxu0 0.0
        %269 = vmatpush1.msra.mxu0 0.0
        %270 = vmatprep.subr.mxu0 0.0
        %271 = vmatpush1.msra.mxu0 0.0
        %272 = vmatprep.subr.mxu0 0.0
        %273 = vmatpush1.msra.mxu0 0.0
        %274 = vmatprep.subr.mxu0 0.0
        %275 = vmatpush1.msra.mxu0 0.0
        %276 = vmatprep.subr.mxu0 0.0
        %277 = vmatpush1.msra.mxu0 0.0
        %278 = vmatprep.mubr.f32.mxu0 0.0
        %279 = vmatmul.mubr.f32.gmra.mrb[0].mxu0 %v209
        %v280 = vpop.f32.mrb[0].mxu0
        %v281 = vadd.f32 0.0, %v280
        %v282 = vpop.f32.mrb[0].mxu0
        %v283 = vadd.f32 0.0, %v282
        %284 = vmatprep.mubr.f32.mxu0 0.0
        %285 = vmatmul.mubr.f32.gmra.mrb[0].mxu0 %v212
        %v286 = vpop.f32.mrb[0].mxu0
        %v287 = vadd.f32 0.0, %v286
        %v288 = vpop.f32.mrb[0].mxu0
        %v289 = vadd.f32 0.0, %v288
        %290 = vdwg.mxu0
        %291 = vst [vmem:[%s194] sm:$0xff] %v281
        %292 = vst [vmem:[%s194 + $0x8] sm:$0xff] %v283
        %293 = vst [vmem:[%s194 + $0x10] sm:$0xff] %v287
        %294 = vst [vmem:[%s194 + $0x18] sm:$0xff] %v289
        %s295 = sand.u32 %s91, 1
        %s296 = scalar_lea.sflag [#allocation4], %s295
        %s297 = sand.u32 %s91, 1
        %s298 = smul.addr %s297, 32
        %s299 = scalar_lea.vmem [#allocation7], %s298
        // Predicated region
        $region37: #{tpu_custom_call.1} parent=27 // pred_check
          %p300 = pneg %p101
        $region38: #{tpu_custom_call.1} parent=27 // pred_check_branch
          %302 = sbr.rel (%p300) target = $region40
        $region39: #{tpu_custom_call.1} parent=27 // pred_region
          %s303 = smul.u32 2, %s25
          %s305 = ssub.s32 512, 512
          %306 = vsyncadd %s296, %s305
          %s307 = smul.addr %s24, 4
          %s308 = sadd.s32 %s303, %s307
          %s309 = smul.addr %s308, 128
          %s310 = scalar_lea.hbm %s2, %s309
          %s311 = sshll.u32 %s299, 4
          %s312 = int_to_ptr.vmem [resolvable:$true] %s311
          %317 = dma.vmem_to_hbm [thread:$0]  %s312, 512, %s310, %s296, 256, 256, 16
        $region40: #{tpu_custom_call.1} parent=27 // pred_fallthru
          _
      $region28: #{tpu_custom_call.1} parent=5 // pred_fallthru
        _
      %p318 = scmp.le.s32.totalorder 2, %s15
      // Predicated region
      $region41: #{tpu_custom_call.1} parent=5 // pred_check
        %p319 = pneg %p318
      $region42: #{tpu_custom_call.1} parent=5 // pred_check_branch
        %321 = sbr.rel (%p319) target = $region44
      $region43: #{tpu_custom_call.1} parent=5 // pred_region
        %s322 = ssub.s32 %s15, 2
        // Predicated region
        $region45: #{tpu_custom_call.1} parent=43 // pred_check
          %p323 = pneg %p107
        $region46: #{tpu_custom_call.1} parent=43 // pred_check_branch
          %325 = sbr.rel (%p323) target = $region48
        $region47: #{tpu_custom_call.1} parent=43 // pred_region
          %s326 = sand.u32 %s92, 1
          %s327 = scalar_lea.sflag [#allocation4], %s326
          %s328 = sand.u32 %s92, 1
          %s329 = smul.addr %s328, 32
          %s330 = scalar_lea.vmem [#allocation7], %s329
          %331 = dma.done %s327, 512
        $region48: #{tpu_custom_call.1} parent=43 // pred_fallthru
          _
      $region44: #{tpu_custom_call.1} parent=5 // pred_fallthru
        _
    $region6: #{tpu_custom_call.1} parent=1 // loop_footer
      %s19 = sadd.s32 1, %s15
    $region7: #{tpu_custom_call.1} parent=1 // loop_footer_branch
      %14 = sbr.rel target = $region3
    $region8: #{tpu_custom_call.1} parent=1 // loop_exit
      _
    %332 = vsyncpa [#allocation3], 1
    %s333 = scalar_lea.sflag [#allocation3], 1
    %334 = vsyncpa %s333, 1
    %335 = vsyncpa [#allocation6], 1
    %s336 = scalar_lea.sflag [#allocation6], 1
    %337 = vsyncpa %s336, 1
    %338 = vsyncpa [#allocation4], 1
    %s339 = scalar_lea.sflag [#allocation4], 1
    %340 = vsyncpa %s339, 1

</llo_original>
